<compile_context>
chip_gen: v5e
topology: v5e:2x2
jax: 0.10.0
libtpu: 0.0.40
codegen_flags: <defaults>
</compile_context>

<pallas_src>
import jax
import jax.numpy as jnp
from jax.experimental import pallas as pl
from jax.experimental.pallas import tpu as pltpu

_LANE_CANDIDATES = (1024, 512, 256, 128)   # widest lane-dense layout first
_TARGET_TILE_BYTES = 2 * 1024 * 1024       # ~2 MiB per array per tile
_MIN_GRID_STEPS = 4                        # keep pipelining + v7x megacore split engaged
_DEFAULT_MIN_PALLAS_BYTES = 256 * 1024     # below this, fused XLA wins (launch overhead)


def _sublane_multiple(dtype) -> int:
    """Minimum second-minor tile multiple for this dtype."""
    itemsize = jnp.dtype(dtype).itemsize
    if itemsize >= 4:
        return 8
    if itemsize == 2:
        return 16
    return 32


def _pick_lane(n_elem: int, sublane: int):
    """Widest lane width whose full (sublane, lane) tile divides n_elem; None if ragged."""
    for lane in _LANE_CANDIDATES:
        if n_elem % (lane * sublane) == 0:
            return lane
    return None


def _tiling(rows: int, lane: int, itemsize: int, sublane: int):
    """Pick tile_rows targeting ~2 MiB tiles, but never fewer than ~_MIN_GRID_STEPS steps."""
    target_rows = max(sublane, (_TARGET_TILE_BYTES // (lane * itemsize)) // sublane * sublane)
    # Shrink tiles if 2 MiB tiles would leave fewer than _MIN_GRID_STEPS grid steps.
    min_step_rows = pl.cdiv(pl.cdiv(rows, _MIN_GRID_STEPS), sublane) * sublane
    tile_rows = max(sublane, min(target_rows, min_step_rows, rows))
    grid = (pl.cdiv(rows, tile_rows),)
    return tile_rows, grid


def _add_double_kernel(a_ref, b_ref, o_ref):
    # c = a + b ; out = c + c   (two VPU adds; HBM-bandwidth bound)
    c = a_ref[...] + b_ref[...]
    o_ref[...] = (c + c).astype(o_ref.dtype)


def _scalar_square_add_kernel(a_ref, b_ref, o_ref):
    # (a * a) + scalar_b, computed in a's dtype (matches torch .add(b.item())).
    a = a_ref[...]
    o_ref[...] = (a * a + b_ref[0].astype(a.dtype)).astype(o_ref.dtype)


def simple_add_module(a: jax.Array, b: jax.Array, *, inplace: bool = False,
                      min_pallas_bytes: int = _DEFAULT_MIN_PALLAS_BYTES) -> jax.Array:
    """Pallas equivalent of SimpleAddModule(inplace).forward(a, b)."""
    if b.ndim == 0:
        return _scalar_branch(a, b, min_pallas_bytes)

    assert a.shape == b.shape, "broadcasting not exercised by this module test"
    out_dtype = jnp.promote_types(a.dtype, b.dtype)
    n_elem = a.size
    sublane = max(_sublane_multiple(a.dtype), _sublane_multiple(b.dtype),
                  _sublane_multiple(out_dtype))
    lane = _pick_lane(n_elem, sublane)

    if lane is None or n_elem * jnp.dtype(out_dtype).itemsize < min_pallas_bytes:
        # Ragged or tiny: fused XLA elementwise (no pad / slice HBM round trips).
        # TODO(synk): could instead mask the final partial tile in-kernel for ragged sizes.
        c = a + b
        return c + c

    rows = n_elem // lane
    a_slab = a.reshape(rows, lane)          # pure reshape: element count is tile-aligned
    b_slab = b.reshape(rows, lane)
    tile_rows, grid = _tiling(rows, lane, jnp.dtype(out_dtype).itemsize, sublane)

    # inplace=True mirrors PyTorch's add_ path: alias output onto a's buffer
    # (effective only when the caller donates a, e.g. jit + donate_argnums).
    aliases = {0: 0} if (inplace and a.dtype == out_dtype) else {}

    out_slab = pl.pallas_call(
        _add_double_kernel,
        out_shape=jax.ShapeDtypeStruct((rows, lane), out_dtype),
        grid_spec=pl.GridSpec(
            grid=grid,
            in_specs=[
                pl.BlockSpec((tile_rows, lane), lambda i: (i, 0)),
                pl.BlockSpec((tile_rows, lane), lambda i: (i, 0)),
            ],
            out_specs=pl.BlockSpec((tile_rows, lane), lambda i: (i, 0)),
        ),
        compiler_params=pltpu.CompilerParams(
            dimension_semantics=("parallel",),  # megacore sharding on v7x
        ),
        input_output_aliases=aliases,
    )(a_slab, b_slab)

    return out_slab.reshape(a.shape)


def _scalar_branch(a: jax.Array, b: jax.Array, min_pallas_bytes: int) -> jax.Array:
    n_elem = a.size
    sublane = _sublane_multiple(a.dtype)
    lane = _pick_lane(n_elem, sublane)

    if lane is None or n_elem * jnp.dtype(a.dtype).itemsize < min_pallas_bytes:
        # Ragged or tiny: fused XLA path.
        return a * a + b.astype(a.dtype)

    rows = n_elem // lane
    a_slab = a.reshape(rows, lane)
    tile_rows, grid = _tiling(rows, lane, jnp.dtype(a.dtype).itemsize, sublane)
    b_smem = b.astype(jnp.float32).reshape(1)   # 32-bit scalar in SMEM

    out_slab = pl.pallas_call(
        _scalar_square_add_kernel,
        out_shape=jax.ShapeDtypeStruct((rows, lane), a.dtype),
        grid_spec=pl.GridSpec(
            grid=grid,
            in_specs=[
                pl.BlockSpec((tile_rows, lane), lambda i: (i, 0)),
                pl.BlockSpec(memory_space=pltpu.MemorySpace.SMEM),
            ],
            out_specs=pl.BlockSpec((tile_rows, lane), lambda i: (i, 0)),
        ),
        compiler_params=pltpu.CompilerParams(
            dimension_semantics=("parallel",),
        ),
    )(a_slab, b_smem)

    return out_slab.reshape(a.shape)


if __name__ == "__main__":
    key = jax.random.PRNGKey(0)
    ka, kb, ks, kc, kd = jax.random.split(key, 5)

    # --- Tensor-tensor branch, small module-typical shape, forced Pallas path ---
    a = jax.random.normal(ka, (2, 4, 16, 16), dtype=jnp.float32)
    b = jax.random.normal(kb, (2, 4, 16, 16), dtype=jnp.float32)
    ref = (a + b) * 2.0
    out = jax.block_until_ready(simple_add_module(a, b, min_pallas_bytes=0))
    assert jnp.allclose(out, ref, atol=1e-6, rtol=1e-6), "small tensor branch mismatch"

    # Same shape through the default dispatch (below the cutoff -> fused XLA path)
    out_small = jax.block_until_ready(simple_add_module(a, b))
    assert jnp.allclose(out_small, ref, atol=1e-6, rtol=1e-6), "small fallback mismatch"

    # --- Large input: tiled, pipelined Pallas path (lane=1024, 2 MiB tiles, 4 steps) ---
    a_big = jax.random.normal(kc, (8, 64, 64, 64), dtype=jnp.float32)
    b_big = jax.random.normal(kd, (8, 64, 64, 64), dtype=jnp.float32)
    ref_big = (a_big + b_big) * 2.0
    out_big = jax.block_until_ready(simple_add_module(a_big, b_big))
    assert jnp.allclose(out_big, ref_big, atol=1e-6, rtol=1e-6), "tiled branch mismatch"

    # --- inplace=True variant (PyTorch add_): aliased output, donated input under jit ---
    ip_fn = jax.jit(lambda x, y: simple_add_module(x, y, inplace=True),
                    donate_argnums=(0,))
    out_ip = jax.block_until_ready(ip_fn(jnp.array(a_big), b_big))
    assert jnp.allclose(out_ip, ref_big, atol=1e-6, rtol=1e-6), "inplace branch mismatch"

    # --- Ragged size: fused XLA fallback (no pad/slice HBM round trips) ---
    a_rag = jax.random.normal(ka, (3, 5, 7, 11), dtype=jnp.float32)
    b_rag = jax.random.normal(kb, (3, 5, 7, 11), dtype=jnp.float32)
    out_rag = jax.block_until_ready(simple_add_module(a_rag, b_rag))
    ref_rag = (a_rag + b_rag) * 2.0
    assert jnp.allclose(out_rag, ref_rag, atol=1e-6, rtol=1e-6), "ragged branch mismatch"

    # --- Scalar-b branch: (a * a).add(b.item()) ---
    b_scalar = jax.random.normal(ks, (), dtype=jnp.float32)
    ref_s = a * a + b_scalar
    out_s = jax.block_until_ready(simple_add_module(a, b_scalar, min_pallas_bytes=0))
    assert jnp.allclose(out_s, ref_s, atol=1e-6, rtol=1e-6), "scalar branch mismatch"
    out_s_fb = jax.block_until_ready(simple_add_module(a, b_scalar))
    assert jnp.allclose(out_s_fb, ref_s, atol=1e-6, rtol=1e-6), "scalar fallback mismatch"

    print("KERNEL_OK")
</pallas_src>

<mosaic_0001>
module attributes {stable_mosaic.version = 11 : i64} {
  func.func @_add_double_kernel(%arg0: i32, %arg1: memref<8x256xf32, #tpu.memory_space<vmem>>, %arg2: memref<8x256xf32, #tpu.memory_space<vmem>>, %arg3: memref<8x256xf32, #tpu.memory_space<vmem>>) attributes {dimension_semantics = [#tpu.dimension_semantics<parallel>], iteration_bounds = array<i64: 1>, scalar_prefetch = 0 : i64, scratch_operands = 0 : i64, tpu.core_type = #tpu.core_type<tc>, window_params = [{transform_indices = @transform_0, window_bounds = array<i64: 8, 256>}, {transform_indices = @transform_1, window_bounds = array<i64: 8, 256>}, {transform_indices = @transform_2, window_bounds = array<i64: 8, 256>}]} {
    %c0 = arith.constant 0 : index
    %c0_0 = arith.constant 0 : index
    %0 = vector.load %arg1[%c0, %c0_0] : memref<8x256xf32, #tpu.memory_space<vmem>>, vector<8x256xf32>
    %c0_1 = arith.constant 0 : index
    %c0_2 = arith.constant 0 : index
    %1 = vector.load %arg2[%c0_1, %c0_2] : memref<8x256xf32, #tpu.memory_space<vmem>>, vector<8x256xf32>
    %2 = arith.addf %0, %1 : vector<8x256xf32>
    %3 = arith.addf %2, %2 : vector<8x256xf32>
    %c0_3 = arith.constant 0 : index
    %c0_4 = arith.constant 0 : index
    %4 = vector.load %arg3[%c0_3, %c0_4] : memref<8x256xf32, #tpu.memory_space<vmem>>, vector<8x256xf32>
    tpu.vector_store %arg3[%c0_3, %c0_4], %3 {strides = array<i32>} : memref<8x256xf32, #tpu.memory_space<vmem>>, vector<8x256xf32>,
    return
  }
  func.func @transform_0(%arg0: i32) -> (i32, i32) {
    %c0_i32 = arith.constant 0 : i32
    %c0_i32_0 = arith.constant 0 : i32
    return %arg0, %c0_i32 : i32, i32
  }
  func.func @transform_1(%arg0: i32) -> (i32, i32) {
    %c0_i32 = arith.constant 0 : i32
    %c0_i32_0 = arith.constant 0 : i32
    return %arg0, %c0_i32 : i32, i32
  }
  func.func @transform_2(%arg0: i32) -> (i32, i32) {
    %c0_i32 = arith.constant 0 : i32
    %c0_i32_0 = arith.constant 0 : i32
    return %arg0, %c0_i32 : i32, i32
  }
}

</mosaic_0001>

<llo_original>
// kernel: tpu_custom_call.1
$region0: #{tpu_custom_call.1}
  #allocation0 [shape = 'u32[]', space=smem, size = 0x4, offset = 0x4, fixed_abs, tag = 'smem constant byte address 0x4 - core index']
  #allocation1 [shape = 'u32[72,128]{1,0:T(1,128)}', space=vmem, size = 0x9000, scoped, tag = 'internal scratch']
  %s0 = inlined_call_operand.hbm [shape: f32[8,256], index: 0, kind: input, shape index: {}]
  %s1 = inlined_call_operand.hbm [shape: f32[8,256], index: 1, kind: input, shape index: {}]
  %s2 = inlined_call_operand.hbm [shape: f32[8,256], index: 2, kind: output, shape index: {}]
  %s3 = sld [smem:[#allocation0]]
  $region26: #{tpu_custom_call.1} parent=0
    _
  %s5 = ssub.s32 1, %s3
  %s6 = scalar_select 0, %s5, %s3
  $region1: #{tpu_custom_call.1} parent=0
    #allocation2 [shape = 'u8[8192]{0}', space=vmem, size = 0x2000, scoped, tag = 'input window, operand 0, single buffered']
    #allocation3 [shape = 's32[1]{0}', space=sflag, size = 0x4, scoped, tag = 'scoped memory for tpu_custom_call.1']
    #allocation4 [shape = 's32[1]{0}', space=sflag, size = 0x4, scoped, tag = 'scoped memory for tpu_custom_call.1']
    #allocation5 [shape = 'u8[8192]{0}', space=vmem, size = 0x2000, scoped, tag = 'input window, operand 1, single buffered']
    #allocation6 [shape = 's32[1]{0}', space=sflag, size = 0x4, scoped, tag = 'scoped memory for tpu_custom_call.1']
    #allocation7 [shape = 'u8[8192]{0}', space=vmem, size = 0x2000, scoped, tag = 'output window, operand 0, single buffered']
    %7 = vsyncpa [#allocation3], 0
    %8 = vsyncpa [#allocation6], 0
    %9 = vsyncpa [#allocation4], 0
    // Predicated region
    $region2: #{tpu_custom_call.1} parent=1 // pred_check
      _
    $region3: #{tpu_custom_call.1} parent=1 // pred_check_branch
      %11 = sbr.rel (0) target = $region5
    $region4: #{tpu_custom_call.1} parent=1 // pred_region
      %13 = vsyncadd [#allocation3], 0
      %s15 = sshll.u32 %s0, 4
      %s16 = int_to_ptr.hbm [resolvable:$true] %s15
      %s17 = sshll.u32 [#allocation2], 4
      %s18 = int_to_ptr.vmem [resolvable:$true] %s17
      %20 = dma.hbm_to_vmem [thread:$0]  %s16, 256, %s18, [#allocation3]
    $region5: #{tpu_custom_call.1} parent=1 // pred_fallthru
      _
    // Predicated region
    $region6: #{tpu_custom_call.1} parent=1 // pred_check
      _
    $region7: #{tpu_custom_call.1} parent=1 // pred_check_branch
      %22 = sbr.rel (0) target = $region9
    $region8: #{tpu_custom_call.1} parent=1 // pred_region
      %24 = vsyncadd [#allocation6], 0
      %s26 = sshll.u32 %s1, 4
      %s27 = int_to_ptr.hbm [resolvable:$true] %s26
      %s28 = sshll.u32 [#allocation5], 4
      %s29 = int_to_ptr.vmem [resolvable:$true] %s28
      %31 = dma.hbm_to_vmem [thread:$0]  %s27, 256, %s29, [#allocation6]
    $region9: #{tpu_custom_call.1} parent=1 // pred_fallthru
      _
    // Predicated region
    $region10: #{tpu_custom_call.1} parent=1 // pred_check
      _
    $region11: #{tpu_custom_call.1} parent=1 // pred_check_branch
      %33 = sbr.rel (0) target = $region13
    $region12: #{tpu_custom_call.1} parent=1 // pred_region
      %35 = dma.done [#allocation3], 256
    $region13: #{tpu_custom_call.1} parent=1 // pred_fallthru
      _
    // Predicated region
    $region14: #{tpu_custom_call.1} parent=1 // pred_check
      _
    $region15: #{tpu_custom_call.1} parent=1 // pred_check_branch
      %37 = sbr.rel (0) target = $region17
    $region16: #{tpu_custom_call.1} parent=1 // pred_region
      %39 = dma.done [#allocation6], 256
    $region17: #{tpu_custom_call.1} parent=1 // pred_fallthru
      _
    %v40 = vld [vmem:[#allocation2] sm:$0xff]
    %v41 = vld [vmem:[#allocation2 + $0x8] sm:$0xff]
    %v42 = vld [vmem:[#allocation5] sm:$0xff]
    %v43 = vld [vmem:[#allocation5 + $0x8] sm:$0xff]
    %v44 = vadd.f32 %v40, %v42
    %v45 = vadd.f32 %v41, %v43
    %v46 = vadd.f32 %v44, %v44
    %v47 = vadd.f32 %v45, %v45
    %48 = vst [vmem:[#allocation7] sm:$0xff] %v46
    %49 = vst [vmem:[#allocation7 + $0x8] sm:$0xff] %v47
    // Predicated region
    $region18: #{tpu_custom_call.1} parent=1 // pred_check
      _
    $region19: #{tpu_custom_call.1} parent=1 // pred_check_branch
      %51 = sbr.rel (0) target = $region21
    $region20: #{tpu_custom_call.1} parent=1 // pred_region
      %53 = vsyncadd [#allocation4], 0
      %s55 = sshll.u32 [#allocation7], 4
      %s56 = int_to_ptr.vmem [resolvable:$true] %s55
      %s57 = sshll.u32 %s2, 4
      %s58 = int_to_ptr.hbm [resolvable:$true] %s57
      %60 = dma.vmem_to_hbm [thread:$0]  %s56, 256, %s58, [#allocation4]
    $region21: #{tpu_custom_call.1} parent=1 // pred_fallthru
      _
    // Predicated region
    $region22: #{tpu_custom_call.1} parent=1 // pred_check
      _
    $region23: #{tpu_custom_call.1} parent=1 // pred_check_branch
      %62 = sbr.rel (0) target = $region25
    $region24: #{tpu_custom_call.1} parent=1 // pred_region
      %64 = dma.done [#allocation4], 256
    $region25: #{tpu_custom_call.1} parent=1 // pred_fallthru
      _
    %65 = vsyncpa [#allocation3], 1
    %66 = vsyncpa [#allocation6], 1
    %67 = vsyncpa [#allocation4], 1

</llo_original>
